<compile_context>
chip_gen: v5e
topology: v5e:2x2
jax: 0.10.0
libtpu: 0.0.40
codegen_flags: <defaults>
</compile_context>

<pallas_src>
import math

import jax
import jax.numpy as jnp
from jax.experimental import pallas as pl
from jax.experimental.pallas import tpu as pltpu

_LANE = 128
_SUB = 8
_TARGET_BLOCK_BYTES = 4 * 1024 * 1024      # per-input block target (~4 MiB)
_VMEM_LIMIT_BYTES = 32 * 1024 * 1024       # above v5e's 16 MiB scoped default
_MIN_KERNEL_BYTES = 2 * 1024 * 1024        # below this, plain JAX fuses better


def _round_up(x, m):
    return (x + m - 1) // m * m


def _shake_drop_kernel(scale_ref, x_ref, o_ref):
    """out = scale * x for one (b_tile, lane_tile) block.

    scale_ref : VMEM (b_tile, 1) float32 — per-sample scales, broadcast over lanes.
    x_ref/o_ref : VMEM (b_tile, lane_tile) in the activation dtype.
    Multiply happens in f32 via dtype promotion; only the result is cast.
    """
    o_ref[...] = (x_ref[...] * scale_ref[...]).astype(o_ref.dtype)


def _choose_tiles(n, p, itemsize, target_bytes):
    """Pick (b_tile, lane_tile) so the block is ~target_bytes and legal:
    second-last dim multiple of 8 or == n, last dim multiple of 128 or == p."""
    row_bytes = p * itemsize
    if row_bytes * _SUB <= target_bytes:
        # Whole rows per block; at least 8 samples fit inside the target.
        lane_tile = p                                   # == full dim: always legal
        b_max = max(_SUB, target_bytes // max(row_bytes, 1))
        b_tile = min(n, b_max)
        if b_tile < n:                                  # must be a multiple of 8
            b_tile = max(_SUB, (b_tile // _SUB) * _SUB)
    else:
        # Tile the feature axis in 128-lane multiples (boundary block masked).
        lane_tile = max(_LANE, (target_bytes // (_SUB * itemsize)) // _LANE * _LANE)
        lane_tile = min(lane_tile, _round_up(p, _LANE))
        b_tile = min(n, _SUB)                           # 8 rows, or all if n < 8
    return b_tile, lane_tile


def _scaled_copy(x, scale_per_sample, *, target_block_bytes=_TARGET_BLOCK_BYTES,
                 min_kernel_bytes=_MIN_KERNEL_BYTES):
    """out[i] = scale[i] * x[i], broadcasting scale over all trailing dims."""
    orig_shape = x.shape
    n = orig_shape[0]
    p = math.prod(orig_shape[1:])
    itemsize = jnp.dtype(x.dtype).itemsize

    scale_f32 = scale_per_sample.astype(jnp.float32)

    # Fast path: tiny activations — a custom call is a fusion barrier plus
    # fixed launch cost; XLA's fused broadcast-multiply wins here.
    if n == 0 or p == 0 or n * p * itemsize < min_kernel_bytes:
        bshape = (n,) + (1,) * (len(orig_shape) - 1)
        return (x * scale_f32.reshape(bshape)).astype(x.dtype)

    b_tile, lane_tile = _choose_tiles(n, p, itemsize, target_block_bytes)
    grid = (pl.cdiv(n, b_tile), pl.cdiv(p, lane_tile))

    x2 = x.reshape(n, p)                 # free view (contiguous reshape)
    scale2 = scale_f32.reshape(n, 1)

    out2 = pl.pallas_call(
        _shake_drop_kernel,
        out_shape=jax.ShapeDtypeStruct((n, p), x.dtype),
        grid=grid,
        in_specs=[
            pl.BlockSpec((b_tile, 1), lambda b, l: (b, 0)),          # scales
            pl.BlockSpec((b_tile, lane_tile), lambda b, l: (b, l)),  # data
        ],
        out_specs=pl.BlockSpec((b_tile, lane_tile), lambda b, l: (b, l)),
        compiler_params=pltpu.CompilerParams(
            dimension_semantics=("parallel", "parallel"),
            vmem_limit_bytes=_VMEM_LIMIT_BYTES),
        cost_estimate=pl.CostEstimate(
            flops=n * p,
            transcendentals=0,
            bytes_accessed=(2 * n * p + n) * itemsize),
    )(scale2, x2)

    return out2.reshape(orig_shape)      # free view back to (N, C, H, W)


def shake_drop(x, key, *, training=True, p_drop=0.5, alpha_range=(-1.0, 1.0)):
    """ShakeDrop forward. x: (N, C, H, W)."""
    if not training:
        # Eval: deterministic uniform scaling. Plain JAX so XLA fuses the
        # constant multiply into producers/consumers (no custom-call barrier).
        return x * jnp.asarray(1.0 - p_drop, dtype=x.dtype)

    k_gate, k_alpha = jax.random.split(key)
    gate = jax.random.bernoulli(k_gate, p=1.0 - p_drop)      # whole-batch gate
    alpha = jax.random.uniform(k_alpha, (x.shape[0],), dtype=jnp.float32,
                               minval=alpha_range[0], maxval=alpha_range[1])
    # gate == 1 -> identity: skip the whole HBM round trip (the op is purely
    # bandwidth bound, so skipping the copy is the biggest average win).
    return jax.lax.cond(gate,
                        lambda xx: xx,
                        lambda xx: _scaled_copy(xx, alpha),
                        x)


if __name__ == "__main__":
    key = jax.random.PRNGKey(0)
    k_x, k_sd = jax.random.split(key)

    # Small NCHW input consistent with the module's (N,1,1,1) alpha broadcast.
    x = jax.random.normal(k_x, (2, 4, 16, 16), dtype=jnp.float32)

    # --- Direct kernel check (force the Pallas path): lane-aligned shape -----
    scale = jnp.array([0.5, -1.25], dtype=jnp.float32)
    y_scaled = jax.block_until_ready(
        _scaled_copy(x, scale, min_kernel_bytes=0))
    assert jnp.allclose(y_scaled, x * scale[:, None, None, None], atol=1e-6)

    # --- Non-128-aligned shape (full-extent block, no padding) ---------------
    x_odd = jax.random.normal(jax.random.PRNGKey(1), (3, 3, 7, 7),
                              dtype=jnp.float32)
    scale_odd = jnp.array([2.0, -0.5, 0.25], dtype=jnp.float32)
    y_odd = jax.block_until_ready(
        _scaled_copy(x_odd, scale_odd, min_kernel_bytes=0))
    assert jnp.allclose(y_odd, x_odd * scale_odd[:, None, None, None],
                        atol=1e-6)

    # --- Masked-boundary path: multi-step grid with ragged batch & lanes -----
    x_rag = jax.random.normal(jax.random.PRNGKey(2), (10, 8, 5, 25),
                              dtype=jnp.float32)          # p = 1000, n = 10
    scale_rag = jax.random.uniform(jax.random.PRNGKey(3), (10,),
                                   dtype=jnp.float32, minval=-1.0, maxval=1.0)
    y_rag = jax.block_until_ready(
        _scaled_copy(x_rag, scale_rag, target_block_bytes=4096,
                     min_kernel_bytes=0))
    assert jnp.allclose(y_rag, x_rag * scale_rag[:, None, None, None],
                        atol=1e-6)

    # --- bf16 input: multiply in f32, cast result only -----------------------
    x_bf = jax.random.normal(jax.random.PRNGKey(4), (4, 8, 16, 16),
                             dtype=jnp.bfloat16)
    scale_bf = jnp.array([0.75, -0.3, 1.5, -1.0], dtype=jnp.float32)
    y_bf = jax.block_until_ready(
        _scaled_copy(x_bf, scale_bf, min_kernel_bytes=0))
    ref_bf = (x_bf.astype(jnp.float32)
              * scale_bf[:, None, None, None]).astype(jnp.bfloat16)
    assert jnp.allclose(y_bf.astype(jnp.float32), ref_bf.astype(jnp.float32),
                        atol=1e-6)

    # --- Training-mode forward (stochastic gate / per-sample alpha) ----------
    y_train = jax.block_until_ready(
        shake_drop(x, k_sd, training=True, p_drop=0.5, alpha_range=(-1.0, 1.0)))
    gate = jax.random.bernoulli(jax.random.split(k_sd)[0], p=0.5)
    alpha = jax.random.uniform(jax.random.split(k_sd)[1], (x.shape[0],),
                               dtype=jnp.float32, minval=-1.0, maxval=1.0)
    scale_ref = jnp.where(gate, jnp.ones_like(alpha), alpha)
    assert jnp.allclose(y_train, x * scale_ref[:, None, None, None], atol=1e-6)

    # --- Eval-mode forward: deterministic x * (1 - p_drop) -------------------
    y_eval = jax.block_until_ready(shake_drop(x, k_sd, training=False,
                                              p_drop=0.5))
    assert jnp.allclose(y_eval, x * 0.5, atol=1e-6)

    print("KERNEL_OK")
</pallas_src>

<mosaic_0001>
module attributes {stable_mosaic.version = 11 : i64} {
  func.func @_shake_drop_kernel(%arg0: i32, %arg1: i32, %arg2: memref<2x1xf32, #tpu.memory_space<vmem>>, %arg3: memref<2x1024xf32, #tpu.memory_space<vmem>>, %arg4: memref<2x1024xf32, #tpu.memory_space<vmem>>) attributes {dimension_semantics = [#tpu.dimension_semantics<parallel>, #tpu.dimension_semantics<parallel>], iteration_bounds = array<i64: 1, 1>, scalar_prefetch = 0 : i64, scratch_operands = 0 : i64, tpu.core_type = #tpu.core_type<tc>, window_params = [{transform_indices = @transform_0, window_bounds = array<i64: 2, 1>}, {transform_indices = @transform_1, window_bounds = array<i64: 2, 1024>}, {transform_indices = @transform_2, window_bounds = array<i64: 2, 1024>}]} {
    %c0 = arith.constant 0 : index
    %c0_0 = arith.constant 0 : index
    %0 = vector.load %arg3[%c0, %c0_0] : memref<2x1024xf32, #tpu.memory_space<vmem>>, vector<2x1024xf32>
    %c0_1 = arith.constant 0 : index
    %c0_2 = arith.constant 0 : index
    %1 = vector.load %arg2[%c0_1, %c0_2] : memref<2x1xf32, #tpu.memory_space<vmem>>, vector<2x1xf32>
    %2 = vector.broadcast %1 : vector<2x1xf32> to vector<2x1024xf32>
    %3 = arith.mulf %0, %2 : vector<2x1024xf32>
    %c0_3 = arith.constant 0 : index
    %c0_4 = arith.constant 0 : index
    %4 = vector.load %arg4[%c0_3, %c0_4] : memref<2x1024xf32, #tpu.memory_space<vmem>>, vector<2x1024xf32>
    tpu.vector_store %arg4[%c0_3, %c0_4], %3 {strides = array<i32>} : memref<2x1024xf32, #tpu.memory_space<vmem>>, vector<2x1024xf32>,
    return
  }
  func.func @transform_0(%arg0: i32, %arg1: i32) -> (i32, i32) {
    %c0_i32 = arith.constant 0 : i32
    %c0_i32_0 = arith.constant 0 : i32
    return %arg0, %c0_i32 : i32, i32
  }
  func.func @transform_1(%arg0: i32, %arg1: i32) -> (i32, i32) {
    %c0_i32 = arith.constant 0 : i32
    return %arg0, %arg1 : i32, i32
  }
  func.func @transform_2(%arg0: i32, %arg1: i32) -> (i32, i32) {
    %c0_i32 = arith.constant 0 : i32
    return %arg0, %arg1 : i32, i32
  }
}

</mosaic_0001>

<llo_original>
// kernel: tpu_custom_call.1
$region0: #{tpu_custom_call.1}
  #allocation0 [shape = 'u32[]', space=smem, size = 0x4, offset = 0x4, fixed_abs, tag = 'smem constant byte address 0x4 - core index']
  #allocation1 [shape = 'u32[72,128]{1,0:T(1,128)}', space=vmem, size = 0x9000, scoped, tag = 'internal scratch']
  %s0 = inlined_call_operand.vmem [shape: f32[2,1], index: 0, kind: input, shape index: {}]
  %s1 = inlined_call_operand.hbm [shape: f32[2,1024], index: 1, kind: input, shape index: {}]
  %s2 = inlined_call_operand.hbm [shape: f32[2,1024], index: 2, kind: output, shape index: {}]
  %s3 = sld [smem:[#allocation0]]
  $region22: #{tpu_custom_call.1} parent=0
    _
  %s5 = ssub.s32 1, %s3
  %s6 = scalar_select 0, %s5, %s3
  $region1: #{tpu_custom_call.1} parent=0
    #allocation2 [shape = 'u8[8192]{0}', space=vmem, size = 0x2000, scoped, tag = 'input window, operand 1, single buffered']
    #allocation3 [shape = 's32[1]{0}', space=sflag, size = 0x4, scoped, tag = 'scoped memory for tpu_custom_call.1']
    #allocation4 [shape = 's32[1]{0}', space=sflag, size = 0x4, scoped, tag = 'scoped memory for tpu_custom_call.1']
    #allocation5 [shape = 'u8[8192]{0}', space=vmem, size = 0x2000, scoped, tag = 'output window, operand 0, single buffered']
    %7 = vsyncpa [#allocation3], 0
    %8 = vsyncpa [#allocation4], 0
    // Predicated region
    $region2: #{tpu_custom_call.1} parent=1 // pred_check
      _
    $region3: #{tpu_custom_call.1} parent=1 // pred_check_branch
      %10 = sbr.rel (0) target = $region5
    $region4: #{tpu_custom_call.1} parent=1 // pred_region
      _
    $region5: #{tpu_custom_call.1} parent=1 // pred_fallthru
      _
    // Predicated region
    $region6: #{tpu_custom_call.1} parent=1 // pred_check
      _
    $region7: #{tpu_custom_call.1} parent=1 // pred_check_branch
      %12 = sbr.rel (0) target = $region9
    $region8: #{tpu_custom_call.1} parent=1 // pred_region
      %14 = vsyncadd [#allocation3], 0
      %s16 = sshll.u32 %s1, 4
      %s17 = int_to_ptr.hbm [resolvable:$true] %s16
      %s18 = sshll.u32 [#allocation2], 4
      %s19 = int_to_ptr.vmem [resolvable:$true] %s18
      %21 = dma.hbm_to_vmem [thread:$0]  %s17, 256, %s19, [#allocation3]
    $region9: #{tpu_custom_call.1} parent=1 // pred_fallthru
      _
    // Predicated region
    $region10: #{tpu_custom_call.1} parent=1 // pred_check
      _
    $region11: #{tpu_custom_call.1} parent=1 // pred_check_branch
      %23 = sbr.rel (0) target = $region13
    $region12: #{tpu_custom_call.1} parent=1 // pred_region
      %25 = dma.done [#allocation3], 256
    $region13: #{tpu_custom_call.1} parent=1 // pred_fallthru
      _
    %v26 = vld [vmem:[#allocation2] sm:$0xff]
    %v27 = vld [vmem:[#allocation2 + $0x8] sm:$0xff]
    %v28 = vld [vmem:[%s0] sm:$0x3]
    %30 = vset.pattern.permute.xlu0 0
    %31 = vperm.xlu0 %30, %v28
    %v32 = vpop.permute.xlu0 %31
    %v34 = vunpack.c.l.s4 269488144
    %v35 = vunpack.c.0.s8 %v34
    %v36 = vperm.slane %v32, %v35
    %v38 = vmul.f32 %v26, %v36
    %v39 = vmul.f32 %v27, %v36
    %40 = vst [vmem:[#allocation5] sm:$0xff] %v38
    %41 = vst [vmem:[#allocation5 + $0x8] sm:$0xff] %v39
    // Predicated region
    $region14: #{tpu_custom_call.1} parent=1 // pred_check
      _
    $region15: #{tpu_custom_call.1} parent=1 // pred_check_branch
      %43 = sbr.rel (0) target = $region17
    $region16: #{tpu_custom_call.1} parent=1 // pred_region
      %45 = vsyncadd [#allocation4], 0
      %s47 = sshll.u32 [#allocation5], 4
      %s48 = int_to_ptr.vmem [resolvable:$true] %s47
      %s49 = sshll.u32 %s2, 4
      %s50 = int_to_ptr.hbm [resolvable:$true] %s49
      %52 = dma.vmem_to_hbm [thread:$0]  %s48, 256, %s50, [#allocation4]
    $region17: #{tpu_custom_call.1} parent=1 // pred_fallthru
      _
    // Predicated region
    $region18: #{tpu_custom_call.1} parent=1 // pred_check
      _
    $region19: #{tpu_custom_call.1} parent=1 // pred_check_branch
      %54 = sbr.rel (0) target = $region21
    $region20: #{tpu_custom_call.1} parent=1 // pred_region
      %56 = dma.done [#allocation4], 256
    $region21: #{tpu_custom_call.1} parent=1 // pred_fallthru
      _
    %57 = vsyncpa [#allocation3], 1
    %58 = vsyncpa [#allocation4], 1

</llo_original>
